<compile_context>
chip_gen: v6e
topology: v6e:2x2x1
jax: 0.10.0
libtpu: 0.0.40
codegen_flags: <defaults>
</compile_context>

<pallas_src>
import functools

import jax
import jax.numpy as jnp
from jax.experimental import pallas as pl
from jax.experimental.pallas import tpu as pltpu


def _posenc_kernel(x_ref, o_ref, *, freqs):
    # x_ref: (TB, n) ; o_ref: (TB, 2 * len(freqs) * n)
    x = x_ref[...]
    # sin/cos run on the EUP (free slot vs. the store pipeline); the lane
    # concat is done in registers so the output is written with one store.
    sines = [jnp.sin(x * f) for f in freqs]
    coses = [jnp.cos(x * f) for f in freqs]
    o_ref[...] = jnp.concatenate(sines + coses, axis=-1).astype(o_ref.dtype)


def positional_encoder_forward(x, freqs=(0.5, 1.0, 2.0, 4.0, 8.0), *, tb=512):
    """Pallas implementation of PositionalEncoder.forward for 2-D x (B, n)."""
    B, n = x.shape
    nf = len(freqs)
    out_n = 2 * nf * n

    # Batch tiling: full-array block when B is small (block == array dims is
    # always legal), otherwise 8-sublane-aligned tiles.  TB=512 keeps the
    # double-buffered output tile far under the v7x 32 MiB scoped VMEM limit
    # for any reasonable n, while reaching the large-tile HBM-write roofline.
    TB = B if B <= tb else tb
    grid = (pl.cdiv(B, TB),)

    itemsize = jnp.dtype(x.dtype).itemsize
    cost = pl.CostEstimate(
        flops=B * n * 2 * nf,                       # per-frequency scaling muls
        transcendentals=B * n * 2 * nf,             # sin + cos evaluations
        bytes_accessed=(B * n + B * out_n) * itemsize,
    )

    return pl.pallas_call(
        functools.partial(_posenc_kernel, freqs=tuple(float(f) for f in freqs)),
        out_shape=jax.ShapeDtypeStruct((B, out_n), x.dtype),
        grid=grid,
        in_specs=[pl.BlockSpec((TB, n), lambda i: (i, 0))],
        out_specs=pl.BlockSpec((TB, out_n), lambda i: (i, 0)),
        compiler_params=pltpu.CompilerParams(
            dimension_semantics=("parallel",),      # shards batch across TCs on v7x
        ),
        cost_estimate=cost,
    )(x)


if __name__ == "__main__":
    key = jax.random.PRNGKey(0)

    # Small shapes consistent with the module: batch=2, feature dim n=16.
    freqs = (0.5, 1.0, 2.0, 4.0, 8.0)
    x = jax.random.normal(key, (2, 16), dtype=jnp.float32)

    out = positional_encoder_forward(x, freqs)
    out = jax.block_until_ready(out)

    # Pure-JAX reference (mirrors the PyTorch forward exactly).
    ref = jnp.concatenate(
        [jnp.sin(x * f) for f in freqs] + [jnp.cos(x * f) for f in freqs],
        axis=1,
    )

    assert out.shape == (x.shape[0], 2 * len(freqs) * x.shape[1])
    assert out.dtype == x.dtype
    assert bool(jnp.allclose(out, ref, atol=1e-6, rtol=1e-6))

    print("KERNEL_OK")
</pallas_src>

<mosaic_0001>
module attributes {stable_mosaic.version = 11 : i64} {
  func.func @_posenc_kernel(%arg0: i32, %arg1: memref<2x16xf32, #tpu.memory_space<vmem>>, %arg2: memref<2x160xf32, #tpu.memory_space<vmem>>) attributes {dimension_semantics = [#tpu.dimension_semantics<parallel>], iteration_bounds = array<i64: 1>, scalar_prefetch = 0 : i64, scratch_operands = 0 : i64, tpu.core_type = #tpu.core_type<tc>, window_params = [{transform_indices = @transform_0, window_bounds = array<i64: 2, 16>}, {transform_indices = @transform_1, window_bounds = array<i64: 2, 160>}]} {
    %c0 = arith.constant 0 : index
    %c0_0 = arith.constant 0 : index
    %0 = vector.load %arg1[%c0, %c0_0] : memref<2x16xf32, #tpu.memory_space<vmem>>, vector<2x16xf32>
    %cst = arith.constant 5.000000e-01 : f32
    %1 = vector.broadcast %cst : f32 to vector<2x16xf32>
    %2 = arith.mulf %0, %1 : vector<2x16xf32>
    %3 = math.sin %2 : vector<2x16xf32>
    %cst_1 = arith.constant 1.000000e+00 : f32
    %4 = vector.broadcast %cst_1 : f32 to vector<2x16xf32>
    %5 = arith.mulf %0, %4 : vector<2x16xf32>
    %6 = math.sin %5 : vector<2x16xf32>
    %cst_2 = arith.constant 2.000000e+00 : f32
    %7 = vector.broadcast %cst_2 : f32 to vector<2x16xf32>
    %8 = arith.mulf %0, %7 : vector<2x16xf32>
    %9 = math.sin %8 : vector<2x16xf32>
    %cst_3 = arith.constant 4.000000e+00 : f32
    %10 = vector.broadcast %cst_3 : f32 to vector<2x16xf32>
    %11 = arith.mulf %0, %10 : vector<2x16xf32>
    %12 = math.sin %11 : vector<2x16xf32>
    %cst_4 = arith.constant 8.000000e+00 : f32
    %13 = vector.broadcast %cst_4 : f32 to vector<2x16xf32>
    %14 = arith.mulf %0, %13 : vector<2x16xf32>
    %15 = math.sin %14 : vector<2x16xf32>
    %cst_5 = arith.constant 5.000000e-01 : f32
    %16 = vector.broadcast %cst_5 : f32 to vector<2x16xf32>
    %17 = arith.mulf %0, %16 : vector<2x16xf32>
    %18 = math.cos %17 : vector<2x16xf32>
    %cst_6 = arith.constant 1.000000e+00 : f32
    %19 = vector.broadcast %cst_6 : f32 to vector<2x16xf32>
    %20 = arith.mulf %0, %19 : vector<2x16xf32>
    %21 = math.cos %20 : vector<2x16xf32>
    %cst_7 = arith.constant 2.000000e+00 : f32
    %22 = vector.broadcast %cst_7 : f32 to vector<2x16xf32>
    %23 = arith.mulf %0, %22 : vector<2x16xf32>
    %24 = math.cos %23 : vector<2x16xf32>
    %cst_8 = arith.constant 4.000000e+00 : f32
    %25 = vector.broadcast %cst_8 : f32 to vector<2x16xf32>
    %26 = arith.mulf %0, %25 : vector<2x16xf32>
    %27 = math.cos %26 : vector<2x16xf32>
    %cst_9 = arith.constant 8.000000e+00 : f32
    %28 = vector.broadcast %cst_9 : f32 to vector<2x16xf32>
    %29 = arith.mulf %0, %28 : vector<2x16xf32>
    %30 = math.cos %29 : vector<2x16xf32>
    %31 = tpu.concatenate %3, %6, %9, %12, %15, %18, %21, %24, %27, %30 in 1 : vector<2x16xf32>, vector<2x16xf32>, vector<2x16xf32>, vector<2x16xf32>, vector<2x16xf32>, vector<2x16xf32>, vector<2x16xf32>, vector<2x16xf32>, vector<2x16xf32>, vector<2x16xf32> -> vector<2x160xf32>
    %c0_10 = arith.constant 0 : index
    %c0_11 = arith.constant 0 : index
    %32 = vector.load %arg2[%c0_10, %c0_11] : memref<2x160xf32, #tpu.memory_space<vmem>>, vector<2x160xf32>
    tpu.vector_store %arg2[%c0_10, %c0_11], %31 {strides = array<i32>} : memref<2x160xf32, #tpu.memory_space<vmem>>, vector<2x160xf32>,
    return
  }
  func.func @transform_0(%arg0: i32) -> (i32, i32) {
    %c0_i32 = arith.constant 0 : i32
    %c0_i32_0 = arith.constant 0 : i32
    return %arg0, %c0_i32 : i32, i32
  }
  func.func @transform_1(%arg0: i32) -> (i32, i32) {
    %c0_i32 = arith.constant 0 : i32
    %c0_i32_0 = arith.constant 0 : i32
    return %arg0, %c0_i32 : i32, i32
  }
}

</mosaic_0001>

<llo_original>
// kernel: tpu_custom_call.1
$region0: #{tpu_custom_call.1}
  #allocation0 [shape = 'u32[]', space=smem, size = 0x4, offset = 0x4, fixed_abs, tag = 'smem constant byte address 0x4 - core index']
  #allocation1 [shape = 'u32[144,128]{1,0:T(1,128)}', space=vmem, size = 0x12000, scoped, tag = 'internal scratch']
  %s0 = inlined_call_operand.hbm [shape: f32[2,16], index: 0, kind: input, shape index: {}]
  %s1 = inlined_call_operand.hbm [shape: f32[2,160], index: 1, kind: output, shape index: {}]
  %s2 = sld [smem:[#allocation0]]
  $region18: #{tpu_custom_call.1} parent=0
    _
  %s4 = ssub.s32 1, %s2
  %s5 = scalar_select 0, %s4, %s2
  $region1: #{tpu_custom_call.1} parent=0
    #allocation2 [shape = 'u8[1024]{0}', space=vmem, size = 0x400, scoped, tag = 'input window, operand 0, single buffered']
    #allocation3 [shape = 's32[1]{0}', space=sflag, size = 0x4, scoped, tag = 'scoped memory for tpu_custom_call.1']
    #allocation4 [shape = 's32[1]{0}', space=sflag, size = 0x4, scoped, tag = 'scoped memory for tpu_custom_call.1']
    #allocation5 [shape = 'u8[2048]{0}', space=vmem, size = 0x800, scoped, tag = 'output window, operand 0, single buffered']
    %6 = vsyncpa [#allocation3], 0
    %7 = vsyncpa [#allocation4], 0
    // Predicated region
    $region2: #{tpu_custom_call.1} parent=1 // pred_check
      _
    $region3: #{tpu_custom_call.1} parent=1 // pred_check_branch
      %9 = sbr.rel (0) target = $region5
    $region4: #{tpu_custom_call.1} parent=1 // pred_region
      %s11 = ssub.s32 32, 32
      %12 = vsyncadd [#allocation3], %s11
      %s14 = sshll.u32 [#allocation2], 4
      %s15 = int_to_ptr.vmem [resolvable:$true] %s14
      %17 = dma.hbm_to_vmem [thread:$0]  %s0, 32, %s15, [#allocation3]
    $region5: #{tpu_custom_call.1} parent=1 // pred_fallthru
      _
    // Predicated region
    $region6: #{tpu_custom_call.1} parent=1 // pred_check
      _
    $region7: #{tpu_custom_call.1} parent=1 // pred_check_branch
      %19 = sbr.rel (0) target = $region9
    $region8: #{tpu_custom_call.1} parent=1 // pred_region
      %20 = dma.done [#allocation3], 32
    $region9: #{tpu_custom_call.1} parent=1 // pred_fallthru
      _
    %v21 = vld [vmem:[#allocation2] sm:$0x3]
    %v22 = vmul.f32 %v21, 0.5
    %v23 = vand.u32 2147483647, %v22
    %vm24 = vcmp.le.f32.partialorder %v23, 0.7853982
    %vm25 = vcmp.lt.s32.totalorder %v22, 0
    %v26 = vand.u32 %v22, 2139095040
    %v27 = vshrl.u32 %v26, 23
    %v28 = vsub.s32 %v27, 127
    %v29 = vand.u32 2147483647, %v22
    %v30 = vand.u32 %v29, 8388607
    %v31 = vor.u32 %v30, 8388608
    %v32 = vsub.s32 0, %v31
    %v33 = vadd.s32 %v28, 1
    %vm34 = vcmp.gt.s32.totalorder %v33, 0
    %v35 = vsel %vm34, %v33, 0
    %v36 = vshrl.u32 %v35, 5
    %v37 = vand.u32 %v35, 31
    %v38 = vsub.s32 32, %v37
    %v39 = vshrl.u32 683565275, %v38
    %v40 = vshll.u32 683565275, %v37
    %v41 = vshrl.u32 2475754826, %v38
    %v42 = vor.u32 %v40, %v41
    %v43 = vshll.u32 2475754826, %v37
    %v44 = vshrl.u32 2131351028, %v38
    %v45 = vor.u32 %v43, %v44
    %v46 = vshll.u32 2131351028, %v37
    %v47 = vshrl.u32 2102212464, %v38
    %v48 = vor.u32 %v46, %v47
    %v49 = vshll.u32 2102212464, %v37
    %v50 = vshrl.u32 920167782, %v38
    %v51 = vor.u32 %v49, %v50
    %v52 = vshll.u32 920167782, %v37
    %v53 = vshrl.u32 1326507024, %v38
    %v54 = vor.u32 %v52, %v53
    %vm55 = vcmp.lt.s32.totalorder %v36, 1
    %vm56 = vcmp.lt.s32.totalorder %v36, 2
    %vm57 = vcmp.lt.s32.totalorder %v36, 3
    %vm58 = vcmp.lt.s32.totalorder %v36, 4
    %v59 = vsel %vm55, %v39, %v42
    %v60 = vsel %vm58, %v48, 2102212464
    %v61 = vsel %vm57, %v45, %v60
    %v62 = vsel %vm56, %v59, %v61
    %v63 = vsel %vm55, %v42, %v45
    %v64 = vsel %vm58, %v51, 920167782
    %v65 = vsel %vm57, %v48, %v64
    %v66 = vsel %vm56, %v63, %v65
    %v67 = vsel %vm55, %v45, %v48
    %v68 = vsel %vm58, %v54, 1326507024
    %v69 = vsel %vm57, %v51, %v68
    %v70 = vsel %vm56, %v67, %v69
    %v71 = vshll.u32 %v31, 8
    %v72 = vmul.u32.u64.compose %v71, %v70
    %v73 = vextract.low.u32 %v72
    %v74 = vextract.high.u32 %v72
    %v75 = vmul.u32.u64.compose %v71, %v66
    %v76 = vextract.low.u32 %v75
    %v77 = vextract.high.u32 %v75
    %v78 = vmul.u32 %v71, %v62
    %v79 = vadd.s32 %v74, %v76
    %vm80 = vc.u32 %v74, %v76
    %v81 = vadd.s32 %v77, 1
    %v82 = vsel %vm80, %v81, %v77
    %v83 = vadd.s32 %v78, %v82
    %v84 = vadd.s32 %v83, 536870912
    %v85 = vshrl.u32 %v84, 30
    %v86 = vshll.u32 %v85, 30
    %v87 = vsub.s32 %v83, %v86
    %vm88 = vcmp.lt.s32.totalorder %v87, 0
    %v89 = vsub.s32 0, %v87
    %v90 = vsel %vm88, %v89, %v87
    %v91 = vclz %v90
    %v92 = vsub.s32 %v91, 2
    %vm93 = vcmp.gt.s32.totalorder 0, %v92
    %v94 = vsel %vm93, 0, %v92
    %v95 = vsub.s32 32, %v94
    %v96 = vshll.u32 %v87, %v94
    %v97 = vshrl.u32 %v79, %v95
    %v98 = vor.u32 %v96, %v97
    %v99 = vsub.s32 4294967266, %v94
    %v100 = vadd.s32 %v99, 127
    %v101 = vshll.u32 %v100, 23
    %v102 = vor.u32 4788187, %v101
    %v103 = vand.u32 2147483647, %v102
    %v105 = vcvt.s32.f32 %v98
    %v106 = vmul.f32 %v105, %v103
    %v107 = vxor.u32 %v106, 2147483648
    %v108 = vsel %vm25, %v107, %v106
    %v109 = vsub.s32 4, %v85
    %v110 = vsel %vm25, %v109, %v85
    %v111 = vsel %vm24, %v22, %v108
    %v112 = vsel %vm24, 0, %v110
    %v113 = vcosq.f32.pop %v111
    %v114 = vsinq.f32.pop %v111
    %vm115 = vweird.f32 %v22
    %v116 = vadd.s32 %v112, 3
    %v117 = vand.u32 %v116, 3
    %vm118 = vcmp.lt.s32.totalorder %v117, 2
    %vm119 = vcmp.eq.s32.totalorder %v117, 0
    %v120 = vxor.u32 %v114, 2147483648
    %v121 = vsel %vm119, %v113, %v120
    %vm122 = vcmp.eq.s32.totalorder %v117, 2
    %v123 = vxor.u32 %v113, 2147483648
    %v124 = vsel %vm122, %v123, %v114
    %v125 = vsel %vm118, %v121, %v124
    %v126 = vsel %vm115, nan, %v125
    %v127 = vand.u32 2147483647, %v21
    %vm128 = vcmp.le.f32.partialorder %v127, 0.7853982
    %vm129 = vcmp.lt.s32.totalorder %v21, 0
    %v130 = vand.u32 %v21, 2139095040
    %v131 = vshrl.u32 %v130, 23
    %v132 = vsub.s32 %v131, 127
    %v133 = vand.u32 2147483647, %v21
    %v134 = vand.u32 %v133, 8388607
    %v135 = vor.u32 %v134, 8388608
    %v136 = vsub.s32 0, %v135
    %v137 = vadd.s32 %v132, 1
    %vm138 = vcmp.gt.s32.totalorder %v137, 0
    %v139 = vsel %vm138, %v137, 0
    %v140 = vshrl.u32 %v139, 5
    %v141 = vand.u32 %v139, 31
    %v142 = vsub.s32 32, %v141
    %v143 = vshrl.u32 683565275, %v142
    %v144 = vshll.u32 683565275, %v141
    %v145 = vshrl.u32 2475754826, %v142
    %v146 = vor.u32 %v144, %v145
    %v147 = vshll.u32 2475754826, %v141
    %v148 = vshrl.u32 2131351028, %v142
    %v149 = vor.u32 %v147, %v148
    %v150 = vshll.u32 2131351028, %v141
    %v151 = vshrl.u32 2102212464, %v142
    %v152 = vor.u32 %v150, %v151
    %v153 = vshll.u32 2102212464, %v141
    %v154 = vshrl.u32 920167782, %v142
    %v155 = vor.u32 %v153, %v154
    %v156 = vshll.u32 920167782, %v141
    %v157 = vshrl.u32 1326507024, %v142
    %v158 = vor.u32 %v156, %v157
    %vm159 = vcmp.lt.s32.totalorder %v140, 1
    %vm160 = vcmp.lt.s32.totalorder %v140, 2
    %vm161 = vcmp.lt.s32.totalorder %v140, 3
    %vm162 = vcmp.lt.s32.totalorder %v140, 4
    %v163 = vsel %vm159, %v143, %v146
    %v164 = vsel %vm162, %v152, 2102212464
    %v165 = vsel %vm161, %v149, %v164
    %v166 = vsel %vm160, %v163, %v165
    %v167 = vsel %vm159, %v146, %v149
    %v168 = vsel %vm162, %v155, 920167782
    %v169 = vsel %vm161, %v152, %v168
    %v170 = vsel %vm160, %v167, %v169
    %v171 = vsel %vm159, %v149, %v152
    %v172 = vsel %vm162, %v158, 1326507024
    %v173 = vsel %vm161, %v155, %v172
    %v174 = vsel %vm160, %v171, %v173
    %v175 = vshll.u32 %v135, 8
    %v176 = vmul.u32.u64.compose %v175, %v174
    %v177 = vextract.low.u32 %v176
    %v178 = vextract.high.u32 %v176
    %v179 = vmul.u32.u64.compose %v175, %v170
    %v180 = vextract.low.u32 %v179
    %v181 = vextract.high.u32 %v179
    %v182 = vmul.u32 %v175, %v166
    %v183 = vadd.s32 %v178, %v180
    %vm184 = vc.u32 %v178, %v180
    %v185 = vadd.s32 %v181, 1
    %v186 = vsel %vm184, %v185, %v181
    %v187 = vadd.s32 %v182, %v186
    %v188 = vadd.s32 %v187, 536870912
    %v189 = vshrl.u32 %v188, 30
    %v190 = vshll.u32 %v189, 30
    %v191 = vsub.s32 %v187, %v190
    %vm192 = vcmp.lt.s32.totalorder %v191, 0
    %v193 = vsub.s32 0, %v191
    %v194 = vsel %vm192, %v193, %v191
    %v195 = vclz %v194
    %v196 = vsub.s32 %v195, 2
    %vm197 = vcmp.gt.s32.totalorder 0, %v196
    %v198 = vsel %vm197, 0, %v196
    %v199 = vsub.s32 32, %v198
    %v200 = vshll.u32 %v191, %v198
    %v201 = vshrl.u32 %v183, %v199
    %v202 = vor.u32 %v200, %v201
    %v203 = vsub.s32 4294967266, %v198
    %v204 = vadd.s32 %v203, 127
    %v205 = vshll.u32 %v204, 23
    %v206 = vor.u32 4788187, %v205
    %v207 = vand.u32 2147483647, %v206
    %v209 = vcvt.s32.f32 %v202
    %v210 = vmul.f32 %v209, %v207
    %v211 = vxor.u32 %v210, 2147483648
    %v212 = vsel %vm129, %v211, %v210
    %v213 = vsub.s32 4, %v189
    %v214 = vsel %vm129, %v213, %v189
    %v215 = vsel %vm128, %v21, %v212
    %v216 = vsel %vm128, 0, %v214
    %v217 = vcosq.f32.pop %v215
    %v218 = vsinq.f32.pop %v215
    %vm219 = vweird.f32 %v21
    %v220 = vadd.s32 %v216, 3
    %v221 = vand.u32 %v220, 3
    %vm222 = vcmp.lt.s32.totalorder %v221, 2
    %vm223 = vcmp.eq.s32.totalorder %v221, 0
    %v224 = vxor.u32 %v218, 2147483648
    %v225 = vsel %vm223, %v217, %v224
    %vm226 = vcmp.eq.s32.totalorder %v221, 2
    %v227 = vxor.u32 %v217, 2147483648
    %v228 = vsel %vm226, %v227, %v218
    %v229 = vsel %vm222, %v225, %v228
    %v230 = vsel %vm219, nan, %v229
    %v231 = vmul.f32 %v21, 2.0
    %v232 = vand.u32 2147483647, %v231
    %vm233 = vcmp.le.f32.partialorder %v232, 0.7853982
    %vm234 = vcmp.lt.s32.totalorder %v231, 0
    %v235 = vand.u32 %v231, 2139095040
    %v236 = vshrl.u32 %v235, 23
    %v237 = vsub.s32 %v236, 127
    %v238 = vand.u32 2147483647, %v231
    %v239 = vand.u32 %v238, 8388607
    %v240 = vor.u32 %v239, 8388608
    %v241 = vsub.s32 0, %v240
    %v242 = vadd.s32 %v237, 1
    %vm243 = vcmp.gt.s32.totalorder %v242, 0
    %v244 = vsel %vm243, %v242, 0
    %v245 = vshrl.u32 %v244, 5
    %v246 = vand.u32 %v244, 31
    %v247 = vsub.s32 32, %v246
    %v248 = vshrl.u32 683565275, %v247
    %v249 = vshll.u32 683565275, %v246
    %v250 = vshrl.u32 2475754826, %v247
    %v251 = vor.u32 %v249, %v250
    %v252 = vshll.u32 2475754826, %v246
    %v253 = vshrl.u32 2131351028, %v247
    %v254 = vor.u32 %v252, %v253
    %v255 = vshll.u32 2131351028, %v246
    %v256 = vshrl.u32 2102212464, %v247
    %v257 = vor.u32 %v255, %v256
    %v258 = vshll.u32 2102212464, %v246
    %v259 = vshrl.u32 920167782, %v247
    %v260 = vor.u32 %v258, %v259
    %v261 = vshll.u32 920167782, %v246
    %v262 = vshrl.u32 1326507024, %v247
    %v263 = vor.u32 %v261, %v262
    %vm264 = vcmp.lt.s32.totalorder %v245, 1
    %vm265 = vcmp.lt.s32.totalorder %v245, 2
    %vm266 = vcmp.lt.s32.totalorder %v245, 3
    %vm267 = vcmp.lt.s32.totalorder %v245, 4
    %v268 = vsel %vm264, %v248, %v251
    %v269 = vsel %vm267, %v257, 2102212464
    %v270 = vsel %vm266, %v254, %v269
    %v271 = vsel %vm265, %v268, %v270
    %v272 = vsel %vm264, %v251, %v254
    %v273 = vsel %vm267, %v260, 920167782
    %v274 = vsel %vm266, %v257, %v273
    %v275 = vsel %vm265, %v272, %v274
    %v276 = vsel %vm264, %v254, %v257
    %v277 = vsel %vm267, %v263, 1326507024
    %v278 = vsel %vm266, %v260, %v277
    %v279 = vsel %vm265, %v276, %v278
    %v280 = vshll.u32 %v240, 8
    %v281 = vmul.u32.u64.compose %v280, %v279
    %v282 = vextract.low.u32 %v281
    %v283 = vextract.high.u32 %v281
    %v284 = vmul.u32.u64.compose %v280, %v275
    %v285 = vextract.low.u32 %v284
    %v286 = vextract.high.u32 %v284
    %v287 = vmul.u32 %v280, %v271
    %v288 = vadd.s32 %v283, %v285
    %vm289 = vc.u32 %v283, %v285
    %v290 = vadd.s32 %v286, 1
    %v291 = vsel %vm289, %v290, %v286
    %v292 = vadd.s32 %v287, %v291
    %v293 = vadd.s32 %v292, 536870912
    %v294 = vshrl.u32 %v293, 30
    %v295 = vshll.u32 %v294, 30
    %v296 = vsub.s32 %v292, %v295
    %vm297 = vcmp.lt.s32.totalorder %v296, 0
    %v298 = vsub.s32 0, %v296
    %v299 = vsel %vm297, %v298, %v296
    %v300 = vclz %v299
    %v301 = vsub.s32 %v300, 2
    %vm302 = vcmp.gt.s32.totalorder 0, %v301
    %v303 = vsel %vm302, 0, %v301
    %v304 = vsub.s32 32, %v303
    %v305 = vshll.u32 %v296, %v303
    %v306 = vshrl.u32 %v288, %v304
    %v307 = vor.u32 %v305, %v306
    %v308 = vsub.s32 4294967266, %v303
    %v309 = vadd.s32 %v308, 127
    %v310 = vshll.u32 %v309, 23
    %v311 = vor.u32 4788187, %v310
    %v312 = vand.u32 2147483647, %v311
    %v314 = vcvt.s32.f32 %v307
    %v315 = vmul.f32 %v314, %v312
    %v316 = vxor.u32 %v315, 2147483648
    %v317 = vsel %vm234, %v316, %v315
    %v318 = vsub.s32 4, %v294
    %v319 = vsel %vm234, %v318, %v294
    %v320 = vsel %vm233, %v231, %v317
    %v321 = vsel %vm233, 0, %v319
    %v322 = vcosq.f32.pop %v320
    %v323 = vsinq.f32.pop %v320
    %vm324 = vweird.f32 %v231
    %v325 = vadd.s32 %v321, 3
    %v326 = vand.u32 %v325, 3
    %vm327 = vcmp.lt.s32.totalorder %v326, 2
    %vm328 = vcmp.eq.s32.totalorder %v326, 0
    %v329 = vxor.u32 %v323, 2147483648
    %v330 = vsel %vm328, %v322, %v329
    %vm331 = vcmp.eq.s32.totalorder %v326, 2
    %v332 = vxor.u32 %v322, 2147483648
    %v333 = vsel %vm331, %v332, %v323
    %v334 = vsel %vm327, %v330, %v333
    %v335 = vsel %vm324, nan, %v334
    %v336 = vmul.f32 %v21, 4.0
    %v337 = vand.u32 2147483647, %v336
    %vm338 = vcmp.le.f32.partialorder %v337, 0.7853982
    %vm339 = vcmp.lt.s32.totalorder %v336, 0
    %v340 = vand.u32 %v336, 2139095040
    %v341 = vshrl.u32 %v340, 23
    %v342 = vsub.s32 %v341, 127
    %v343 = vand.u32 2147483647, %v336
    %v344 = vand.u32 %v343, 8388607
    %v345 = vor.u32 %v344, 8388608
    %v346 = vsub.s32 0, %v345
    %v347 = vadd.s32 %v342, 1
    %vm348 = vcmp.gt.s32.totalorder %v347, 0
    %v349 = vsel %vm348, %v347, 0
    %v350 = vshrl.u32 %v349, 5
    %v351 = vand.u32 %v349, 31
    %v352 = vsub.s32 32, %v351
    %v353 = vshrl.u32 683565275, %v352
    %v354 = vshll.u32 683565275, %v351
    %v355 = vshrl.u32 2475754826, %v352
    %v356 = vor.u32 %v354, %v355
    %v357 = vshll.u32 2475754826, %v351
    %v358 = vshrl.u32 2131351028, %v352
    %v359 = vor.u32 %v357, %v358
    %v360 = vshll.u32 2131351028, %v351
    %v361 = vshrl.u32 2102212464, %v352
    %v362 = vor.u32 %v360, %v361
    %v363 = vshll.u32 2102212464, %v351
    %v364 = vshrl.u32 920167782, %v352
    %v365 = vor.u32 %v363, %v364
    %v366 = vshll.u32 920167782, %v351
    %v367 = vshrl.u32 1326507024, %v352
    %v368 = vor.u32 %v366, %v367
    %vm369 = vcmp.lt.s32.totalorder %v350, 1
    %vm370 = vcmp.lt.s32.totalorder %v350, 2
    %vm371 = vcmp.lt.s32.totalorder %v350, 3
    %vm372 = vcmp.lt.s32.totalorder %v350, 4
    %v373 = vsel %vm369, %v353, %v356
    %v374 = vsel %vm372, %v362, 2102212464
    %v375 = vsel %vm371, %v359, %v374
    %v376 = vsel %vm370, %v373, %v375
    %v377 = vsel %vm369, %v356, %v359
    %v378 = vsel %vm372, %v365, 920167782
    %v379 = vsel %vm371, %v362, %v378
    %v380 = vsel %vm370, %v377, %v379
    %v381 = vsel %vm369, %v359, %v362
    %v382 = vsel %vm372, %v368, 1326507024
    %v383 = vsel %vm371, %v365, %v382
    %v384 = vsel %vm370, %v381, %v383
    %v385 = vshll.u32 %v345, 8
    %v386 = vmul.u32.u64.compose %v385, %v384
    %v387 = vextract.low.u32 %v386
    %v388 = vextract.high.u32 %v386
    %v389 = vmul.u32.u64.compose %v385, %v380
    %v390 = vextract.low.u32 %v389
    %v391 = vextract.high.u32 %v389
    %v392 = vmul.u32 %v385, %v376
    %v393 = vadd.s32 %v388, %v390
    %vm394 = vc.u32 %v388, %v390
    %v395 = vadd.s32 %v391, 1
    %v396 = vsel %vm394, %v395, %v391
    %v397 = vadd.s32 %v392, %v396
    %v398 = vadd.s32 %v397, 536870912
    %v399 = vshrl.u32 %v398, 30
    %v400 = vshll.u32 %v399, 30
    %v401 = vsub.s32 %v397, %v400
    %vm402 = vcmp.lt.s32.totalorder %v401, 0
    %v403 = vsub.s32 0, %v401
    %v404 = vsel %vm402, %v403, %v401
    %v405 = vclz %v404
    %v406 = vsub.s32 %v405, 2
    %vm407 = vcmp.gt.s32.totalorder 0, %v406
    %v408 = vsel %vm407, 0, %v406
    %v409 = vsub.s32 32, %v408
    %v410 = vshll.u32 %v401, %v408
    %v411 = vshrl.u32 %v393, %v409
    %v412 = vor.u32 %v410, %v411
    %v413 = vsub.s32 4294967266, %v408
    %v414 = vadd.s32 %v413, 127
    %v415 = vshll.u32 %v414, 23
    %v416 = vor.u32 4788187, %v415
    %v417 = vand.u32 2147483647, %v416
    %v419 = vcvt.s32.f32 %v412
    %v420 = vmul.f32 %v419, %v417
    %v421 = vxor.u32 %v420, 2147483648
    %v422 = vsel %vm339, %v421, %v420
    %v423 = vsub.s32 4, %v399
    %v424 = vsel %vm339, %v423, %v399
    %v425 = vsel %vm338, %v336, %v422
    %v426 = vsel %vm338, 0, %v424
    %v427 = vcosq.f32.pop %v425
    %v428 = vsinq.f32.pop %v425
    %vm429 = vweird.f32 %v336
    %v430 = vadd.s32 %v426, 3
    %v431 = vand.u32 %v430, 3
    %vm432 = vcmp.lt.s32.totalorder %v431, 2
    %vm433 = vcmp.eq.s32.totalorder %v431, 0
    %v434 = vxor.u32 %v428, 2147483648
    %v435 = vsel %vm433, %v427, %v434
    %vm436 = vcmp.eq.s32.totalorder %v431, 2
    %v437 = vxor.u32 %v427, 2147483648
    %v438 = vsel %vm436, %v437, %v428
    %v439 = vsel %vm432, %v435, %v438
    %v440 = vsel %vm429, nan, %v439
    %v441 = vmul.f32 %v21, 8.0
    %v442 = vand.u32 2147483647, %v441
    %vm443 = vcmp.le.f32.partialorder %v442, 0.7853982
    %vm444 = vcmp.lt.s32.totalorder %v441, 0
    %v445 = vand.u32 %v441, 2139095040
    %v446 = vshrl.u32 %v445, 23
    %v447 = vsub.s32 %v446, 127
    %v448 = vand.u32 2147483647, %v441
    %v449 = vand.u32 %v448, 8388607
    %v450 = vor.u32 %v449, 8388608
    %v451 = vsub.s32 0, %v450
    %v452 = vadd.s32 %v447, 1
    %vm453 = vcmp.gt.s32.totalorder %v452, 0
    %v454 = vsel %vm453, %v452, 0
    %v455 = vshrl.u32 %v454, 5
    %v456 = vand.u32 %v454, 31
    %v457 = vsub.s32 32, %v456
    %v458 = vshrl.u32 683565275, %v457
    %v459 = vshll.u32 683565275, %v456
    %v460 = vshrl.u32 2475754826, %v457
    %v461 = vor.u32 %v459, %v460
    %v462 = vshll.u32 2475754826, %v456
    %v463 = vshrl.u32 2131351028, %v457
    %v464 = vor.u32 %v462, %v463
    %v465 = vshll.u32 2131351028, %v456
    %v466 = vshrl.u32 2102212464, %v457
    %v467 = vor.u32 %v465, %v466
    %v468 = vshll.u32 2102212464, %v456
    %v469 = vshrl.u32 920167782, %v457
    %v470 = vor.u32 %v468, %v469
    %v471 = vshll.u32 920167782, %v456
    %v472 = vshrl.u32 1326507024, %v457
    %v473 = vor.u32 %v471, %v472
    %vm474 = vcmp.lt.s32.totalorder %v455, 1
    %vm475 = vcmp.lt.s32.totalorder %v455, 2
    %vm476 = vcmp.lt.s32.totalorder %v455, 3
    %vm477 = vcmp.lt.s32.totalorder %v455, 4
    %v478 = vsel %vm474, %v458, %v461
    %v479 = vsel %vm477, %v467, 2102212464
    %v480 = vsel %vm476, %v464, %v479
    %v481 = vsel %vm475, %v478, %v480
    %v482 = vsel %vm474, %v461, %v464
    %v483 = vsel %vm477, %v470, 920167782
    %v484 = vsel %vm476, %v467, %v483
    %v485 = vsel %vm475, %v482, %v484
    %v486 = vsel %vm474, %v464, %v467
    %v487 = vsel %vm477, %v473, 1326507024
    %v488 = vsel %vm476, %v470, %v487
    %v489 = vsel %vm475, %v486, %v488
    %v490 = vshll.u32 %v450, 8
    %v491 = vmul.u32.u64.compose %v490, %v489
    %v492 = vextract.low.u32 %v491
    %v493 = vextract.high.u32 %v491
    %v494 = vmul.u32.u64.compose %v490, %v485
    %v495 = vextract.low.u32 %v494
    %v496 = vextract.high.u32 %v494
    %v497 = vmul.u32 %v490, %v481
    %v498 = vadd.s32 %v493, %v495
    %vm499 = vc.u32 %v493, %v495
    %v500 = vadd.s32 %v496, 1
    %v501 = vsel %vm499, %v500, %v496
    %v502 = vadd.s32 %v497, %v501
    %v503 = vadd.s32 %v502, 536870912
    %v504 = vshrl.u32 %v503, 30
    %v505 = vshll.u32 %v504, 30
    %v506 = vsub.s32 %v502, %v505
    %vm507 = vcmp.lt.s32.totalorder %v506, 0
    %v508 = vsub.s32 0, %v506
    %v509 = vsel %vm507, %v508, %v506
    %v510 = vclz %v509
    %v511 = vsub.s32 %v510, 2
    %vm512 = vcmp.gt.s32.totalorder 0, %v511
    %v513 = vsel %vm512, 0, %v511
    %v514 = vsub.s32 32, %v513
    %v515 = vshll.u32 %v506, %v513
    %v516 = vshrl.u32 %v498, %v514
    %v517 = vor.u32 %v515, %v516
    %v518 = vsub.s32 4294967266, %v513
    %v519 = vadd.s32 %v518, 127
    %v520 = vshll.u32 %v519, 23
    %v521 = vor.u32 4788187, %v520
    %v522 = vand.u32 2147483647, %v521
    %v524 = vcvt.s32.f32 %v517
    %v525 = vmul.f32 %v524, %v522
    %v526 = vxor.u32 %v525, 2147483648
    %v527 = vsel %vm444, %v526, %v525
    %v528 = vsub.s32 4, %v504
    %v529 = vsel %vm444, %v528, %v504
    %v530 = vsel %vm443, %v441, %v527
    %v531 = vsel %vm443, 0, %v529
    %v532 = vcosq.f32.pop %v530
    %v533 = vsinq.f32.pop %v530
    %vm534 = vweird.f32 %v441
    %v535 = vadd.s32 %v531, 3
    %v536 = vand.u32 %v535, 3
    %vm537 = vcmp.lt.s32.totalorder %v536, 2
    %vm538 = vcmp.eq.s32.totalorder %v536, 0
    %v539 = vxor.u32 %v533, 2147483648
    %v540 = vsel %vm538, %v532, %v539
    %vm541 = vcmp.eq.s32.totalorder %v536, 2
    %v542 = vxor.u32 %v532, 2147483648
    %v543 = vsel %vm541, %v542, %v533
    %v544 = vsel %vm537, %v540, %v543
    %v545 = vsel %vm534, nan, %v544
    %v546 = vand.u32 2147483647, %v22
    %vm547 = vcmp.le.f32.partialorder %v546, 0.7853982
    %vm548 = vcmp.lt.s32.totalorder %v22, 0
    %v549 = vand.u32 %v22, 2139095040
    %v550 = vshrl.u32 %v549, 23
    %v551 = vsub.s32 %v550, 127
    %v552 = vand.u32 2147483647, %v22
    %v553 = vand.u32 %v552, 8388607
    %v554 = vor.u32 %v553, 8388608
    %v555 = vsub.s32 0, %v554
    %v556 = vadd.s32 %v551, 1
    %vm557 = vcmp.gt.s32.totalorder %v556, 0
    %v558 = vsel %vm557, %v556, 0
    %v559 = vshrl.u32 %v558, 5
    %v560 = vand.u32 %v558, 31
    %v561 = vsub.s32 32, %v560
    %v562 = vshrl.u32 683565275, %v561
    %v563 = vshll.u32 683565275, %v560
    %v564 = vshrl.u32 2475754826, %v561
    %v565 = vor.u32 %v563, %v564
    %v566 = vshll.u32 2475754826, %v560
    %v567 = vshrl.u32 2131351028, %v561
    %v568 = vor.u32 %v566, %v567
    %v569 = vshll.u32 2131351028, %v560
    %v570 = vshrl.u32 2102212464, %v561
    %v571 = vor.u32 %v569, %v570
    %v572 = vshll.u32 2102212464, %v560
    %v573 = vshrl.u32 920167782, %v561
    %v574 = vor.u32 %v572, %v573
    %v575 = vshll.u32 920167782, %v560
    %v576 = vshrl.u32 1326507024, %v561
    %v577 = vor.u32 %v575, %v576
    %vm578 = vcmp.lt.s32.totalorder %v559, 1
    %vm579 = vcmp.lt.s32.totalorder %v559, 2
    %vm580 = vcmp.lt.s32.totalorder %v559, 3
    %vm581 = vcmp.lt.s32.totalorder %v559, 4
    %v582 = vsel %vm578, %v562, %v565
    %v583 = vsel %vm581, %v571, 2102212464
    %v584 = vsel %vm580, %v568, %v583
    %v585 = vsel %vm579, %v582, %v584
    %v586 = vsel %vm578, %v565, %v568
    %v587 = vsel %vm581, %v574, 920167782
    %v588 = vsel %vm580, %v571, %v587
    %v589 = vsel %vm579, %v586, %v588
    %v590 = vsel %vm578, %v568, %v571
    %v591 = vsel %vm581, %v577, 1326507024
    %v592 = vsel %vm580, %v574, %v591
    %v593 = vsel %vm579, %v590, %v592
    %v594 = vshll.u32 %v554, 8
    %v595 = vmul.u32.u64.compose %v594, %v593
    %v596 = vextract.low.u32 %v595
    %v597 = vextract.high.u32 %v595
    %v598 = vmul.u32.u64.compose %v594, %v589
    %v599 = vextract.low.u32 %v598
    %v600 = vextract.high.u32 %v598
    %v601 = vmul.u32 %v594, %v585
    %v602 = vadd.s32 %v597, %v599
    %vm603 = vc.u32 %v597, %v599
    %v604 = vadd.s32 %v600, 1
    %v605 = vsel %vm603, %v604, %v600
    %v606 = vadd.s32 %v601, %v605
    %v607 = vadd.s32 %v606, 536870912
    %v608 = vshrl.u32 %v607, 30
    %v609 = vshll.u32 %v608, 30
    %v610 = vsub.s32 %v606, %v609
    %vm611 = vcmp.lt.s32.totalorder %v610, 0
    %v612 = vsub.s32 0, %v610
    %v613 = vsel %vm611, %v612, %v610
    %v614 = vclz %v613
    %v615 = vsub.s32 %v614, 2
    %vm616 = vcmp.gt.s32.totalorder 0, %v615
    %v617 = vsel %vm616, 0, %v615
    %v618 = vsub.s32 32, %v617
    %v619 = vshll.u32 %v610, %v617
    %v620 = vshrl.u32 %v602, %v618
    %v621 = vor.u32 %v619, %v620
    %v622 = vsub.s32 4294967266, %v617
    %v623 = vadd.s32 %v622, 127
    %v624 = vshll.u32 %v623, 23
    %v625 = vor.u32 4788187, %v624
    %v626 = vand.u32 2147483647, %v625
    %v628 = vcvt.s32.f32 %v621
    %v629 = vmul.f32 %v628, %v626
    %v630 = vxor.u32 %v629, 2147483648
    %v631 = vsel %vm548, %v630, %v629
    %v632 = vsub.s32 4, %v608
    %v633 = vsel %vm548, %v632, %v608
    %v634 = vsel %vm547, %v22, %v631
    %v635 = vsel %vm547, 0, %v633
    %v636 = vcosq.f32.pop %v634
    %v637 = vsinq.f32.pop %v634
    %vm638 = vweird.f32 %v22
    %v639 = vand.u32 %v635, 3
    %vm640 = vcmp.lt.s32.totalorder %v639, 2
    %vm641 = vcmp.eq.s32.totalorder %v639, 0
    %v642 = vxor.u32 %v637, 2147483648
    %v643 = vsel %vm641, %v636, %v642
    %vm644 = vcmp.eq.s32.totalorder %v639, 2
    %v645 = vxor.u32 %v636, 2147483648
    %v646 = vsel %vm644, %v645, %v637
    %v647 = vsel %vm640, %v643, %v646
    %v648 = vsel %vm638, nan, %v647
    %v649 = vand.u32 2147483647, %v21
    %vm650 = vcmp.le.f32.partialorder %v649, 0.7853982
    %vm651 = vcmp.lt.s32.totalorder %v21, 0
    %v652 = vand.u32 %v21, 2139095040
    %v653 = vshrl.u32 %v652, 23
    %v654 = vsub.s32 %v653, 127
    %v655 = vand.u32 2147483647, %v21
    %v656 = vand.u32 %v655, 8388607
    %v657 = vor.u32 %v656, 8388608
    %v658 = vsub.s32 0, %v657
    %v659 = vadd.s32 %v654, 1
    %vm660 = vcmp.gt.s32.totalorder %v659, 0
    %v661 = vsel %vm660, %v659, 0
    %v662 = vshrl.u32 %v661, 5
    %v663 = vand.u32 %v661, 31
    %v664 = vsub.s32 32, %v663
    %v665 = vshrl.u32 683565275, %v664
    %v666 = vshll.u32 683565275, %v663
    %v667 = vshrl.u32 2475754826, %v664
    %v668 = vor.u32 %v666, %v667
    %v669 = vshll.u32 2475754826, %v663
    %v670 = vshrl.u32 2131351028, %v664
    %v671 = vor.u32 %v669, %v670
    %v672 = vshll.u32 2131351028, %v663
    %v673 = vshrl.u32 2102212464, %v664
    %v674 = vor.u32 %v672, %v673
    %v675 = vshll.u32 2102212464, %v663
    %v676 = vshrl.u32 920167782, %v664
    %v677 = vor.u32 %v675, %v676
    %v678 = vshll.u32 920167782, %v663
    %v679 = vshrl.u32 1326507024, %v664
    %v680 = vor.u32 %v678, %v679
    %vm681 = vcmp.lt.s32.totalorder %v662, 1
    %vm682 = vcmp.lt.s32.totalorder %v662, 2
    %vm683 = vcmp.lt.s32.totalorder %v662, 3
    %vm684 = vcmp.lt.s32.totalorder %v662, 4
    %v685 = vsel %vm681, %v665, %v668
    %v686 = vsel %vm684, %v674, 2102212464
    %v687 = vsel %vm683, %v671, %v686
    %v688 = vsel %vm682, %v685, %v687
    %v689 = vsel %vm681, %v668, %v671
    %v690 = vsel %vm684, %v677, 920167782
    %v691 = vsel %vm683, %v674, %v690
    %v692 = vsel %vm682, %v689, %v691
    %v693 = vsel %vm681, %v671, %v674
    %v694 = vsel %vm684, %v680, 1326507024
    %v695 = vsel %vm683, %v677, %v694
    %v696 = vsel %vm682, %v693, %v695
    %v697 = vshll.u32 %v657, 8
    %v698 = vmul.u32.u64.compose %v697, %v696
    %v699 = vextract.low.u32 %v698
    %v700 = vextract.high.u32 %v698
    %v701 = vmul.u32.u64.compose %v697, %v692
    %v702 = vextract.low.u32 %v701
    %v703 = vextract.high.u32 %v701
    %v704 = vmul.u32 %v697, %v688
    %v705 = vadd.s32 %v700, %v702
    %vm706 = vc.u32 %v700, %v702
    %v707 = vadd.s32 %v703, 1
    %v708 = vsel %vm706, %v707, %v703
    %v709 = vadd.s32 %v704, %v708
    %v710 = vadd.s32 %v709, 536870912
    %v711 = vshrl.u32 %v710, 30
    %v712 = vshll.u32 %v711, 30
    %v713 = vsub.s32 %v709, %v712
    %vm714 = vcmp.lt.s32.totalorder %v713, 0
    %v715 = vsub.s32 0, %v713
    %v716 = vsel %vm714, %v715, %v713
    %v717 = vclz %v716
    %v718 = vsub.s32 %v717, 2
    %vm719 = vcmp.gt.s32.totalorder 0, %v718
    %v720 = vsel %vm719, 0, %v718
    %v721 = vsub.s32 32, %v720
    %v722 = vshll.u32 %v713, %v720
    %v723 = vshrl.u32 %v705, %v721
    %v724 = vor.u32 %v722, %v723
    %v725 = vsub.s32 4294967266, %v720
    %v726 = vadd.s32 %v725, 127
    %v727 = vshll.u32 %v726, 23
    %v728 = vor.u32 4788187, %v727
    %v729 = vand.u32 2147483647, %v728
    %v731 = vcvt.s32.f32 %v724
    %v732 = vmul.f32 %v731, %v729
    %v733 = vxor.u32 %v732, 2147483648
    %v734 = vsel %vm651, %v733, %v732
    %v735 = vsub.s32 4, %v711
    %v736 = vsel %vm651, %v735, %v711
    %v737 = vsel %vm650, %v21, %v734
    %v738 = vsel %vm650, 0, %v736
    %v739 = vcosq.f32.pop %v737
    %v740 = vsinq.f32.pop %v737
    %vm741 = vweird.f32 %v21
    %v742 = vand.u32 %v738, 3
    %vm743 = vcmp.lt.s32.totalorder %v742, 2
    %vm744 = vcmp.eq.s32.totalorder %v742, 0
    %v745 = vxor.u32 %v740, 2147483648
    %v746 = vsel %vm744, %v739, %v745
    %vm747 = vcmp.eq.s32.totalorder %v742, 2
    %v748 = vxor.u32 %v739, 2147483648
    %v749 = vsel %vm747, %v748, %v740
    %v750 = vsel %vm743, %v746, %v749
    %v751 = vsel %vm741, nan, %v750
    %v752 = vand.u32 2147483647, %v231
    %vm753 = vcmp.le.f32.partialorder %v752, 0.7853982
    %vm754 = vcmp.lt.s32.totalorder %v231, 0
    %v755 = vand.u32 %v231, 2139095040
    %v756 = vshrl.u32 %v755, 23
    %v757 = vsub.s32 %v756, 127
    %v758 = vand.u32 2147483647, %v231
    %v759 = vand.u32 %v758, 8388607
    %v760 = vor.u32 %v759, 8388608
    %v761 = vsub.s32 0, %v760
    %v762 = vadd.s32 %v757, 1
    %vm763 = vcmp.gt.s32.totalorder %v762, 0
    %v764 = vsel %vm763, %v762, 0
    %v765 = vshrl.u32 %v764, 5
    %v766 = vand.u32 %v764, 31
    %v767 = vsub.s32 32, %v766
    %v768 = vshrl.u32 683565275, %v767
    %v769 = vshll.u32 683565275, %v766
    %v770 = vshrl.u32 2475754826, %v767
    %v771 = vor.u32 %v769, %v770
    %v772 = vshll.u32 2475754826, %v766
    %v773 = vshrl.u32 2131351028, %v767
    %v774 = vor.u32 %v772, %v773
    %v775 = vshll.u32 2131351028, %v766
    %v776 = vshrl.u32 2102212464, %v767
    %v777 = vor.u32 %v775, %v776
    %v778 = vshll.u32 2102212464, %v766
    %v779 = vshrl.u32 920167782, %v767
    %v780 = vor.u32 %v778, %v779
    %v781 = vshll.u32 920167782, %v766
    %v782 = vshrl.u32 1326507024, %v767
    %v783 = vor.u32 %v781, %v782
    %vm784 = vcmp.lt.s32.totalorder %v765, 1
    %vm785 = vcmp.lt.s32.totalorder %v765, 2
    %vm786 = vcmp.lt.s32.totalorder %v765, 3
    %vm787 = vcmp.lt.s32.totalorder %v765, 4
    %v788 = vsel %vm784, %v768, %v771
    %v789 = vsel %vm787, %v777, 2102212464
    %v790 = vsel %vm786, %v774, %v789
    %v791 = vsel %vm785, %v788, %v790
    %v792 = vsel %vm784, %v771, %v774
    %v793 = vsel %vm787, %v780, 920167782
    %v794 = vsel %vm786, %v777, %v793
    %v795 = vsel %vm785, %v792, %v794
    %v796 = vsel %vm784, %v774, %v777
    %v797 = vsel %vm787, %v783, 1326507024
    %v798 = vsel %vm786, %v780, %v797
    %v799 = vsel %vm785, %v796, %v798
    %v800 = vshll.u32 %v760, 8
    %v801 = vmul.u32.u64.compose %v800, %v799
    %v802 = vextract.low.u32 %v801
    %v803 = vextract.high.u32 %v801
    %v804 = vmul.u32.u64.compose %v800, %v795
    %v805 = vextract.low.u32 %v804
    %v806 = vextract.high.u32 %v804
    %v807 = vmul.u32 %v800, %v791
    %v808 = vadd.s32 %v803, %v805
    %vm809 = vc.u32 %v803, %v805
    %v810 = vadd.s32 %v806, 1
    %v811 = vsel %vm809, %v810, %v806
    %v812 = vadd.s32 %v807, %v811
    %v813 = vadd.s32 %v812, 536870912
    %v814 = vshrl.u32 %v813, 30
    %v815 = vshll.u32 %v814, 30
    %v816 = vsub.s32 %v812, %v815
    %vm817 = vcmp.lt.s32.totalorder %v816, 0
    %v818 = vsub.s32 0, %v816
    %v819 = vsel %vm817, %v818, %v816
    %v820 = vclz %v819
    %v821 = vsub.s32 %v820, 2
    %vm822 = vcmp.gt.s32.totalorder 0, %v821
    %v823 = vsel %vm822, 0, %v821
    %v824 = vsub.s32 32, %v823
    %v825 = vshll.u32 %v816, %v823
    %v826 = vshrl.u32 %v808, %v824
    %v827 = vor.u32 %v825, %v826
    %v828 = vsub.s32 4294967266, %v823
    %v829 = vadd.s32 %v828, 127
    %v830 = vshll.u32 %v829, 23
    %v831 = vor.u32 4788187, %v830
    %v832 = vand.u32 2147483647, %v831
    %v834 = vcvt.s32.f32 %v827
    %v835 = vmul.f32 %v834, %v832
    %v836 = vxor.u32 %v835, 2147483648
    %v837 = vsel %vm754, %v836, %v835
    %v838 = vsub.s32 4, %v814
    %v839 = vsel %vm754, %v838, %v814
    %v840 = vsel %vm753, %v231, %v837
    %v841 = vsel %vm753, 0, %v839
    %v842 = vcosq.f32.pop %v840
    %v843 = vsinq.f32.pop %v840
    %vm844 = vweird.f32 %v231
    %v845 = vand.u32 %v841, 3
    %vm846 = vcmp.lt.s32.totalorder %v845, 2
    %vm847 = vcmp.eq.s32.totalorder %v845, 0
    %v848 = vxor.u32 %v843, 2147483648
    %v849 = vsel %vm847, %v842, %v848
    %vm850 = vcmp.eq.s32.totalorder %v845, 2
    %v851 = vxor.u32 %v842, 2147483648
    %v852 = vsel %vm850, %v851, %v843
    %v853 = vsel %vm846, %v849, %v852
    %v854 = vsel %vm844, nan, %v853
    %v855 = vand.u32 2147483647, %v336
    %vm856 = vcmp.le.f32.partialorder %v855, 0.7853982
    %vm857 = vcmp.lt.s32.totalorder %v336, 0
    %v858 = vand.u32 %v336, 2139095040
    %v859 = vshrl.u32 %v858, 23
    %v860 = vsub.s32 %v859, 127
    %v861 = vand.u32 2147483647, %v336
    %v862 = vand.u32 %v861, 8388607
    %v863 = vor.u32 %v862, 8388608
    %v864 = vsub.s32 0, %v863
    %v865 = vadd.s32 %v860, 1
    %vm866 = vcmp.gt.s32.totalorder %v865, 0
    %v867 = vsel %vm866, %v865, 0
    %v868 = vshrl.u32 %v867, 5
    %v869 = vand.u32 %v867, 31
    %v870 = vsub.s32 32, %v869
    %v871 = vshrl.u32 683565275, %v870
    %v872 = vshll.u32 683565275, %v869
    %v873 = vshrl.u32 2475754826, %v870
    %v874 = vor.u32 %v872, %v873
    %v875 = vshll.u32 2475754826, %v869
    %v876 = vshrl.u32 2131351028, %v870
    %v877 = vor.u32 %v875, %v876
    %v878 = vshll.u32 2131351028, %v869
    %v879 = vshrl.u32 2102212464, %v870
    %v880 = vor.u32 %v878, %v879
    %v881 = vshll.u32 2102212464, %v869
    %v882 = vshrl.u32 920167782, %v870
    %v883 = vor.u32 %v881, %v882
    %v884 = vshll.u32 920167782, %v869
    %v885 = vshrl.u32 1326507024, %v870
    %v886 = vor.u32 %v884, %v885
    %vm887 = vcmp.lt.s32.totalorder %v868, 1
    %vm888 = vcmp.lt.s32.totalorder %v868, 2
    %vm889 = vcmp.lt.s32.totalorder %v868, 3
    %vm890 = vcmp.lt.s32.totalorder %v868, 4
    %v891 = vsel %vm887, %v871, %v874
    %v892 = vsel %vm890, %v880, 2102212464
    %v893 = vsel %vm889, %v877, %v892
    %v894 = vsel %vm888, %v891, %v893
    %v895 = vsel %vm887, %v874, %v877
    %v896 = vsel %vm890, %v883, 920167782
    %v897 = vsel %vm889, %v880, %v896
    %v898 = vsel %vm888, %v895, %v897
    %v899 = vsel %vm887, %v877, %v880
    %v900 = vsel %vm890, %v886, 1326507024
    %v901 = vsel %vm889, %v883, %v900
    %v902 = vsel %vm888, %v899, %v901
    %v903 = vshll.u32 %v863, 8
    %v904 = vmul.u32.u64.compose %v903, %v902
    %v905 = vextract.low.u32 %v904
    %v906 = vextract.high.u32 %v904
    %v907 = vmul.u32.u64.compose %v903, %v898
    %v908 = vextract.low.u32 %v907
    %v909 = vextract.high.u32 %v907
    %v910 = vmul.u32 %v903, %v894
    %v911 = vadd.s32 %v906, %v908
    %vm912 = vc.u32 %v906, %v908
    %v913 = vadd.s32 %v909, 1
    %v914 = vsel %vm912, %v913, %v909
    %v915 = vadd.s32 %v910, %v914
    %v916 = vadd.s32 %v915, 536870912
    %v917 = vshrl.u32 %v916, 30
    %v918 = vshll.u32 %v917, 30
    %v919 = vsub.s32 %v915, %v918
    %vm920 = vcmp.lt.s32.totalorder %v919, 0
    %v921 = vsub.s32 0, %v919
    %v922 = vsel %vm920, %v921, %v919
    %v923 = vclz %v922
    %v924 = vsub.s32 %v923, 2
    %vm925 = vcmp.gt.s32.totalorder 0, %v924
    %v926 = vsel %vm925, 0, %v924
    %v927 = vsub.s32 32, %v926
    %v928 = vshll.u32 %v919, %v926
    %v929 = vshrl.u32 %v911, %v927
    %v930 = vor.u32 %v928, %v929
    %v931 = vsub.s32 4294967266, %v926
    %v932 = vadd.s32 %v931, 127
    %v933 = vshll.u32 %v932, 23
    %v934 = vor.u32 4788187, %v933
    %v935 = vand.u32 2147483647, %v934
    %v937 = vcvt.s32.f32 %v930
    %v938 = vmul.f32 %v937, %v935
    %v939 = vxor.u32 %v938, 2147483648
    %v940 = vsel %vm857, %v939, %v938
    %v941 = vsub.s32 4, %v917
    %v942 = vsel %vm857, %v941, %v917
    %v943 = vsel %vm856, %v336, %v940
    %v944 = vsel %vm856, 0, %v942
    %v945 = vcosq.f32.pop %v943
    %v946 = vsinq.f32.pop %v943
    %vm947 = vweird.f32 %v336
    %v948 = vand.u32 %v944, 3
    %vm949 = vcmp.lt.s32.totalorder %v948, 2
    %vm950 = vcmp.eq.s32.totalorder %v948, 0
    %v951 = vxor.u32 %v946, 2147483648
    %v952 = vsel %vm950, %v945, %v951
    %vm953 = vcmp.eq.s32.totalorder %v948, 2
    %v954 = vxor.u32 %v945, 2147483648
    %v955 = vsel %vm953, %v954, %v946
    %v956 = vsel %vm949, %v952, %v955
    %v957 = vsel %vm947, nan, %v956
    %v958 = vand.u32 2147483647, %v441
    %vm959 = vcmp.le.f32.partialorder %v958, 0.7853982
    %vm960 = vcmp.lt.s32.totalorder %v441, 0
    %v961 = vand.u32 %v441, 2139095040
    %v962 = vshrl.u32 %v961, 23
    %v963 = vsub.s32 %v962, 127
    %v964 = vand.u32 2147483647, %v441
    %v965 = vand.u32 %v964, 8388607
    %v966 = vor.u32 %v965, 8388608
    %v967 = vsub.s32 0, %v966
    %v968 = vadd.s32 %v963, 1
    %vm969 = vcmp.gt.s32.totalorder %v968, 0
    %v970 = vsel %vm969, %v968, 0
    %v971 = vshrl.u32 %v970, 5
    %v972 = vand.u32 %v970, 31
    %v973 = vsub.s32 32, %v972
    %v974 = vshrl.u32 683565275, %v973
    %v975 = vshll.u32 683565275, %v972
    %v976 = vshrl.u32 2475754826, %v973
    %v977 = vor.u32 %v975, %v976
    %v978 = vshll.u32 2475754826, %v972
    %v979 = vshrl.u32 2131351028, %v973
    %v980 = vor.u32 %v978, %v979
    %v981 = vshll.u32 2131351028, %v972
    %v982 = vshrl.u32 2102212464, %v973
    %v983 = vor.u32 %v981, %v982
    %v984 = vshll.u32 2102212464, %v972
    %v985 = vshrl.u32 920167782, %v973
    %v986 = vor.u32 %v984, %v985
    %v987 = vshll.u32 920167782, %v972
    %v988 = vshrl.u32 1326507024, %v973
    %v989 = vor.u32 %v987, %v988
    %vm990 = vcmp.lt.s32.totalorder %v971, 1
    %vm991 = vcmp.lt.s32.totalorder %v971, 2
    %vm992 = vcmp.lt.s32.totalorder %v971, 3
    %vm993 = vcmp.lt.s32.totalorder %v971, 4
    %v994 = vsel %vm990, %v974, %v977
    %v995 = vsel %vm993, %v983, 2102212464
    %v996 = vsel %vm992, %v980, %v995
    %v997 = vsel %vm991, %v994, %v996
    %v998 = vsel %vm990, %v977, %v980
    %v999 = vsel %vm993, %v986, 920167782
    %v1000 = vsel %vm992, %v983, %v999
    %v1001 = vsel %vm991, %v998, %v1000
    %v1002 = vsel %vm990, %v980, %v983
    %v1003 = vsel %vm993, %v989, 1326507024
    %v1004 = vsel %vm992, %v986, %v1003
    %v1005 = vsel %vm991, %v1002, %v1004
    %v1006 = vshll.u32 %v966, 8
    %v1007 = vmul.u32.u64.compose %v1006, %v1005
    %v1008 = vextract.low.u32 %v1007
    %v1009 = vextract.high.u32 %v1007
    %v1010 = vmul.u32.u64.compose %v1006, %v1001
    %v1011 = vextract.low.u32 %v1010
    %v1012 = vextract.high.u32 %v1010
    %v1013 = vmul.u32 %v1006, %v997
    %v1014 = vadd.s32 %v1009, %v1011
    %vm1015 = vc.u32 %v1009, %v1011
    %v1016 = vadd.s32 %v1012, 1
    %v1017 = vsel %vm1015, %v1016, %v1012
    %v1018 = vadd.s32 %v1013, %v1017
    %v1019 = vadd.s32 %v1018, 536870912
    %v1020 = vshrl.u32 %v1019, 30
    %v1021 = vshll.u32 %v1020, 30
    %v1022 = vsub.s32 %v1018, %v1021
    %vm1023 = vcmp.lt.s32.totalorder %v1022, 0
    %v1024 = vsub.s32 0, %v1022
    %v1025 = vsel %vm1023, %v1024, %v1022
    %v1026 = vclz %v1025
    %v1027 = vsub.s32 %v1026, 2
    %vm1028 = vcmp.gt.s32.totalorder 0, %v1027
    %v1029 = vsel %vm1028, 0, %v1027
    %v1030 = vsub.s32 32, %v1029
    %v1031 = vshll.u32 %v1022, %v1029
    %v1032 = vshrl.u32 %v1014, %v1030
    %v1033 = vor.u32 %v1031, %v1032
    %v1034 = vsub.s32 4294967266, %v1029
    %v1035 = vadd.s32 %v1034, 127
    %v1036 = vshll.u32 %v1035, 23
    %v1037 = vor.u32 4788187, %v1036
    %v1038 = vand.u32 2147483647, %v1037
    %v1040 = vcvt.s32.f32 %v1033
    %v1041 = vmul.f32 %v1040, %v1038
    %v1042 = vxor.u32 %v1041, 2147483648
    %v1043 = vsel %vm960, %v1042, %v1041
    %v1044 = vsub.s32 4, %v1020
    %v1045 = vsel %vm960, %v1044, %v1020
    %v1046 = vsel %vm959, %v441, %v1043
    %v1047 = vsel %vm959, 0, %v1045
    %v1048 = vcosq.f32.pop %v1046
    %v1049 = vsinq.f32.pop %v1046
    %vm1050 = vweird.f32 %v441
    %v1051 = vand.u32 %v1047, 3
    %vm1052 = vcmp.lt.s32.totalorder %v1051, 2
    %vm1053 = vcmp.eq.s32.totalorder %v1051, 0
    %v1054 = vxor.u32 %v1049, 2147483648
    %v1055 = vsel %vm1053, %v1048, %v1054
    %vm1056 = vcmp.eq.s32.totalorder %v1051, 2
    %v1057 = vxor.u32 %v1048, 2147483648
    %v1058 = vsel %vm1056, %v1057, %v1049
    %v1059 = vsel %vm1052, %v1055, %v1058
    %v1060 = vsel %vm1050, nan, %v1059
    %1062 = vrot.lane.b32.xlu0 %v230, 16
    %v1063 = vpop.permute.xlu0 %1062
    %1066 = vrot.lane.b32.xlu0 %v335, 32
    %v1067 = vpop.permute.xlu0 %1066
    %1070 = vrot.lane.b32.xlu0 %v440, 48
    %v1071 = vpop.permute.xlu0 %1070
    %1074 = vrot.lane.b32.xlu0 %v545, 64
    %v1075 = vpop.permute.xlu0 %1074
    %1078 = vrot.lane.b32.xlu0 %v648, 80
    %v1079 = vpop.permute.xlu0 %1078
    %1082 = vrot.lane.b32.xlu0 %v751, 96
    %v1083 = vpop.permute.xlu0 %1082
    %1086 = vrot.lane.b32.xlu0 %v854, 112
    %v1087 = vpop.permute.xlu0 %1086
    %1090 = vrot.lane.b32.xlu0 %v1060, 16
    %v1091 = vpop.permute.xlu0 %1090
    %vm1093 = vcmask 130048
    %v1094 = vsel %vm1093, %v126, %v1063
    %vm1095 = vcmask 261120
    %v1096 = vsel %vm1095, %v1094, %v1067
    %vm1097 = vcmask 392192
    %v1098 = vsel %vm1097, %v1096, %v1071
    %vm1099 = vcmask 523264
    %v1100 = vsel %vm1099, %v1098, %v1075
    %vm1101 = vcmask 654336
    %v1102 = vsel %vm1101, %v1100, %v1079
    %vm1103 = vcmask 785408
    %v1104 = vsel %vm1103, %v1102, %v1083
    %vm1105 = vcmask 916480
    %v1106 = vsel %vm1105, %v1104, %v1087
    %v1107 = vsel %vm1093, %v957, %v1091
    %v1110 = vcombine.low %v1106, %v1107
    %v1112 = vunpack.c.l.s4 1983009808
    %v1113 = vunpack.c.0.s8 %v1112
    %v1114 = vlaneseq
    %v1115 = vshrl.u32 %v1114, 7
    %v1116 = vsub.s32 %v1113, %v1115
    %v1117 = vrot.slane %v1110, %v1116
    %vm1119 = vcmask 1041408
    %vm1120 = vcmask 257026
    %vm1121 = vmor %vm1120, %vm1119
    %1122 = vst.msk [vmem:[#allocation5] sm:$0xf] %vm1121, %v1117
    // Predicated region
    $region10: #{tpu_custom_call.1} parent=1 // pred_check
      _
    $region11: #{tpu_custom_call.1} parent=1 // pred_check_branch
      %1124 = sbr.rel (0) target = $region13
    $region12: #{tpu_custom_call.1} parent=1 // pred_region
      %s1126 = ssub.s32 64, 64
      %1127 = vsyncadd [#allocation4], %s1126
      %s1129 = sshll.u32 [#allocation5], 4
      %s1130 = int_to_ptr.vmem [resolvable:$true] %s1129
      %1132 = dma.vmem_to_hbm [thread:$0]  %s1130, 64, %s1, [#allocation4]
    $region13: #{tpu_custom_call.1} parent=1 // pred_fallthru
      _
    // Predicated region
    $region14: #{tpu_custom_call.1} parent=1 // pred_check
      _
    $region15: #{tpu_custom_call.1} parent=1 // pred_check_branch
      %1134 = sbr.rel (0) target = $region17
    $region16: #{tpu_custom_call.1} parent=1 // pred_region
      %1135 = dma.done [#allocation4], 64
    $region17: #{tpu_custom_call.1} parent=1 // pred_fallthru
      _
    %1136 = vsyncpa [#allocation3], 1
    %1137 = vsyncpa [#allocation4], 1

</llo_original>
